<compile_context>
chip_gen: v7x
topology: tpu7x:2x2x1
jax: 0.10.0
libtpu: 0.0.40
codegen_flags: <defaults>
</compile_context>

<pallas_src>
import functools

import jax
import jax.numpy as jnp
import numpy as np
from jax.experimental import pallas as pl
from jax.experimental.pallas import tpu as pltpu


def _round_up(x: int, m: int) -> int:
    return (x + m - 1) // m * m


def _generation_params():
    """Pick activation dtype, VMEM limit and max row tile per TPU generation."""
    try:
        kind = jax.devices()[0].device_kind.lower()
    except Exception:  # no devices visible at trace time; use safe defaults
        kind = ""
    is_v7 = ("v7" in kind) or ("7x" in kind)
    is_v5_or_older = any(f"v{v}" in kind for v in (2, 3, 4, 5))
    # v5e has no bf16 VPU/EUP path -> keep activations in f32 there.
    act_dtype = jnp.float32 if is_v5_or_older else jnp.bfloat16
    # v7x only has 64 MiB physical VMEM; keep headroom. v5e/v6e have 128 MiB.
    vmem_limit = (48 if is_v7 else 64) * 1024 * 1024
    max_tile = 1024 if is_v7 else 2048
    return act_dtype, vmem_limit, max_tile


def gated_attn_kernel(x_ref, w_ab_ref, b_ab_ref, wc_t_ref, bc_ref, out_ref, *,
                      hidden_d: int, n_classes: int, n_sub: int,
                      stream_dtype, act_dtype):
    tile_n = x_ref.shape[0]
    sub_n = tile_n // n_sub

    w_ab = w_ab_ref[...]          # (L, 2D), bf16
    b_ab = b_ab_ref[...]          # (1, 2D), f32
    wc_t = wc_t_ref[...]          # (C, D),  f32
    bc = bc_ref[...]              # (1, C),  f32

    # Static unroll over independent row sub-blocks: lets the LLO scheduler
    # overlap the EUP/VPU activation tail of sub-block s with the MXU GEMM of
    # sub-block s+1.
    for s in range(n_sub):
        rows = pl.ds(s * sub_n, sub_n)
        # Cast x to the MXU streaming dtype inside the kernel (no host-side
        # pad/cast pass over x).
        x = x_ref[rows, :].astype(stream_dtype)              # (sub_n, L)
        # Fused attention_a / attention_b pre-activations: one MXU GEMM with
        # f32 accumulation, bias added in f32.
        h = jnp.dot(x, w_ab, preferred_element_type=jnp.float32) + b_ab
        h = h.astype(act_dtype)                               # bf16 on v6e/v7x
        a = jnp.tanh(h[:, :hidden_d])
        b = jax.nn.sigmoid(h[:, hidden_d:])
        g = a * b                                             # (sub_n, D)

        if n_classes <= 8:
            # Tiny C: VPU multiply + lane reduce (f32 accumulation) instead of
            # an MXU weight swap with only C useful rows / an XLU transpose of
            # the whole activation tile.
            g32 = g.astype(jnp.float32)
            cols = []
            for c in range(n_classes):
                w_row = wc_t[c, :][None, :]                   # (1, D) f32
                cols.append(jnp.sum(g32 * w_row, axis=-1, keepdims=True))
            At = cols[0] if n_classes == 1 else jnp.concatenate(cols, axis=-1)
        else:
            # General C: MXU GEMM, g @ Wc  (contract D of both operands).
            At = jax.lax.dot_general(
                g.astype(stream_dtype), wc_t.astype(stream_dtype),
                dimension_numbers=(((1,), (1,)), ((), ())),
                preferred_element_type=jnp.float32)

        out_ref[rows, :] = (At + bc).astype(out_ref.dtype)


def attn_net_gated(x, wa, ba, wb, bb, wc, bc, *, tile_n=None,
                   stream_dtype=jnp.bfloat16):
    """Pallas implementation of Attn_Net_Gated.forward (dropout=False).

    x:  (N, L)
    wa, wb: (L, D)   ba, bb: (1, D)   (weights stored transposed vs torch)
    wc: (D, C)       bc: (1, C)
    Returns (A, x) with A: (N, C) float32 and x returned unchanged.
    """
    N, L = x.shape
    D = wa.shape[1]
    C = wc.shape[1]

    act_dtype, vmem_limit, max_tile = _generation_params()

    if tile_n is None:
        # Big tiles amortize the ~0.35us/step pipeline overhead; multiples of
        # 256 match the 2x256^2 MXU; aim for ~8 grid steps when N is large so
        # both v7x TensorCores get several steps each.
        tile_n = max(256, min(max_tile, _round_up(pl.cdiv(N, 8), 256)))
    assert tile_n % 256 == 0

    # Partial last block: rows >= N in the last tile hold undefined data, which
    # is safe because every row is independent and Pallas masks out-of-bounds
    # output writes.  Do NOT introduce any cross-row reduction in the kernel.
    grid = (pl.cdiv(N, tile_n),)

    if tile_n >= 1024:
        n_sub = 4
    elif tile_n >= 512:
        n_sub = 2
    else:
        n_sub = 1

    # --- host-side parameter packing (weights only; x is untouched) --------
    w_ab = jnp.concatenate([wa, wb], axis=1).astype(stream_dtype)   # (L, 2D)
    b_ab = jnp.concatenate([ba, bb], axis=1).astype(jnp.float32)    # (1, 2D)
    wc_t = jnp.transpose(wc).astype(jnp.float32)                    # (C, D)
    bc_f = bc.astype(jnp.float32)                                   # (1, C)

    x_itemsize = np.dtype(x.dtype).itemsize
    w_itemsize = np.dtype(stream_dtype).itemsize
    cost = pl.CostEstimate(
        flops=2 * N * L * (2 * D) + 2 * N * D * C,
        transcendentals=2 * N * D,                    # tanh + sigmoid
        bytes_accessed=(N * L * x_itemsize            # x stream (single pass)
                        + L * 2 * D * w_itemsize      # fused Wa|Wb
                        + 2 * D * 4                   # fused bias
                        + C * D * 4 + C * 4           # Wc^T, bc
                        + N * C * 4),                 # output
    )

    kernel = functools.partial(
        gated_attn_kernel, hidden_d=D, n_classes=C, n_sub=n_sub,
        stream_dtype=stream_dtype, act_dtype=act_dtype)

    A = pl.pallas_call(
        kernel,
        out_shape=jax.ShapeDtypeStruct((N, C), jnp.float32),
        grid_spec=pltpu.PrefetchScalarGridSpec(
            num_scalar_prefetch=0,
            grid=grid,
            in_specs=[
                pl.BlockSpec((tile_n, L), lambda i: (i, 0)),   # x tile (native dtype)
                pl.BlockSpec((L, 2 * D), lambda i: (0, 0)),    # Wa|Wb (grid-invariant)
                pl.BlockSpec((1, 2 * D), lambda i: (0, 0)),    # ba|bb
                pl.BlockSpec((C, D), lambda i: (0, 0)),        # Wc^T
                pl.BlockSpec((1, C), lambda i: (0, 0)),        # bc
            ],
            out_specs=pl.BlockSpec((tile_n, C), lambda i: (i, 0)),
        ),
        compiler_params=pltpu.CompilerParams(
            dimension_semantics=("parallel",),
            vmem_limit_bytes=vmem_limit,
        ),
        cost_estimate=cost,
    )(x, w_ab, b_ab, wc_t, bc_f)

    # PyTorch module returns the input tensor x unchanged as the second output.
    return A, x


def _reference(x, wa, ba, wb, bb, wc, bc, *, stream_dtype, act_dtype, small_c):
    # Mirrors the kernel's dtype policy: bf16 GEMM operands with f32 MXU
    # accumulation + f32 bias, activations in act_dtype (bf16 on v6e/v7x,
    # f32 on v5e), small-C projection accumulated in f32.
    xq = x.astype(stream_dtype)
    ha = jnp.dot(xq, wa.astype(stream_dtype),
                 preferred_element_type=jnp.float32) + ba
    hb = jnp.dot(xq, wb.astype(stream_dtype),
                 preferred_element_type=jnp.float32) + bb
    a = jnp.tanh(ha.astype(act_dtype))
    b = jax.nn.sigmoid(hb.astype(act_dtype))
    g = a * b
    if small_c:
        A = jnp.dot(g.astype(jnp.float32), wc.astype(jnp.float32)) + bc
    else:
        A = jnp.dot(g.astype(stream_dtype), wc.astype(stream_dtype),
                    preferred_element_type=jnp.float32) + bc
    return A.astype(jnp.float32)


if __name__ == "__main__":
    # Small shapes consistent with the module (L=1024, D=256 scaled down).
    # N deliberately not a multiple of the tile and > one tile -> exercises the
    # multi-step grid and the masked partial last block.
    N, L, D, C = 600, 128, 128, 1

    key = jax.random.PRNGKey(0)
    kx, ka, kba, kb, kbb, kc, kbc = jax.random.split(key, 7)

    x = jax.random.normal(kx, (N, L), dtype=jnp.float32)
    wa = jax.random.normal(ka, (L, D), dtype=jnp.float32) / np.sqrt(L)
    ba = jax.random.normal(kba, (1, D), dtype=jnp.float32) * 0.1
    wb = jax.random.normal(kb, (L, D), dtype=jnp.float32) / np.sqrt(L)
    bb = jax.random.normal(kbb, (1, D), dtype=jnp.float32) * 0.1
    wc = jax.random.normal(kc, (D, C), dtype=jnp.float32) / np.sqrt(D)
    bc = jax.random.normal(kbc, (1, C), dtype=jnp.float32) * 0.1

    A, x_out = attn_net_gated(x, wa, ba, wb, bb, wc, bc)
    jax.block_until_ready((A, x_out))

    act_dtype, _, _ = _generation_params()
    A_ref = _reference(x, wa, ba, wb, bb, wc, bc,
                       stream_dtype=jnp.bfloat16, act_dtype=act_dtype,
                       small_c=(C <= 8))
    np.testing.assert_allclose(np.asarray(A), np.asarray(A_ref),
                               rtol=1e-2, atol=1e-2)
    np.testing.assert_allclose(np.asarray(x_out), np.asarray(x))

    print("KERNEL_OK")
</pallas_src>

<mosaic_0001>
module attributes {stable_mosaic.version = 11 : i64} {
  func.func @gated_attn_kernel(%arg0: i32, %arg1: memref<256x128xf32, #tpu.memory_space<vmem>>, %arg2: memref<128x256xbf16, #tpu.memory_space<vmem>>, %arg3: memref<1x256xf32, #tpu.memory_space<vmem>>, %arg4: memref<1x128xf32, #tpu.memory_space<vmem>>, %arg5: memref<1x1xf32, #tpu.memory_space<vmem>>, %arg6: memref<256x1xf32, #tpu.memory_space<vmem>>) attributes {dimension_semantics = [#tpu.dimension_semantics<parallel>], iteration_bounds = array<i64: 3>, scalar_prefetch = 0 : i64, scratch_operands = 0 : i64, tpu.core_type = #tpu.core_type<tc>, window_params = [{transform_indices = @transform_0, window_bounds = array<i64: 256, 128>}, {pipeline_mode = #tpu.pipeline_mode<synchronous>, transform_indices = @transform_1, window_bounds = array<i64: 128, 256>}, {pipeline_mode = #tpu.pipeline_mode<synchronous>, transform_indices = @transform_2, window_bounds = array<i64: 1, 256>}, {pipeline_mode = #tpu.pipeline_mode<synchronous>, transform_indices = @transform_3, window_bounds = array<i64: 1, 128>}, {pipeline_mode = #tpu.pipeline_mode<synchronous>, transform_indices = @transform_4, window_bounds = array<i64: 1, 1>}, {transform_indices = @transform_5, window_bounds = array<i64: 256, 1>}]} {
    %c0 = arith.constant 0 : index
    %c0_0 = arith.constant 0 : index
    %0 = vector.load %arg2[%c0, %c0_0] : memref<128x256xbf16, #tpu.memory_space<vmem>>, vector<128x256xbf16>
    %c0_1 = arith.constant 0 : index
    %c0_2 = arith.constant 0 : index
    %1 = vector.load %arg3[%c0_1, %c0_2] : memref<1x256xf32, #tpu.memory_space<vmem>>, vector<1x256xf32>
    %c0_3 = arith.constant 0 : index
    %c0_4 = arith.constant 0 : index
    %2 = vector.load %arg4[%c0_3, %c0_4] : memref<1x128xf32, #tpu.memory_space<vmem>>, vector<1x128xf32>
    %c0_5 = arith.constant 0 : index
    %c0_6 = arith.constant 0 : index
    %3 = vector.load %arg5[%c0_5, %c0_6] : memref<1x1xf32, #tpu.memory_space<vmem>>, vector<1x1xf32>
    %c0_7 = arith.constant 0 : index
    %c0_8 = arith.constant 0 : index
    %4 = vector.load %arg1[%c0_7, %c0_8] : memref<256x128xf32, #tpu.memory_space<vmem>>, vector<256x128xf32>
    %5 = arith.truncf %4 : vector<256x128xf32> to vector<256x128xbf16>
    %cst = arith.constant dense<0.000000e+00> : vector<256x256xf32>
    %6 = tpu.matmul %5, %0, %cst {dimension_numbers = #tpu.dot_dimension_numbers<[1], [0], [0], [1], [0, 0, 1, 1], [], []>} : vector<256x128xbf16>, vector<128x256xbf16>, vector<256x256xf32> -> vector<256x256xf32>
    %7 = vector.broadcast %1 : vector<1x256xf32> to vector<256x256xf32>
    %8 = arith.addf %6, %7 : vector<256x256xf32>
    %9 = arith.truncf %8 : vector<256x256xf32> to vector<256x256xbf16>
    %10 = vector.extract_strided_slice %9 {offsets = [0, 0], sizes = [256, 128], strides = [1, 1]} : vector<256x256xbf16> to vector<256x128xbf16>
    %11 = math.tanh %10 : vector<256x128xbf16>
    %12 = vector.extract_strided_slice %9 {offsets = [0, 128], sizes = [256, 128], strides = [1, 1]} : vector<256x256xbf16> to vector<256x128xbf16>
    %13 = arith.negf %12 : vector<256x128xbf16>
    %14 = math.exp %13 : vector<256x128xbf16>
    %cst_9 = arith.constant 1.000000e+00 : bf16
    %15 = vector.broadcast %cst_9 : bf16 to vector<256x128xbf16>
    %16 = arith.addf %15, %14 : vector<256x128xbf16>
    %17 = arith.divf %15, %16 : vector<256x128xbf16>
    %18 = arith.mulf %11, %17 : vector<256x128xbf16>
    %19 = arith.extf %18 : vector<256x128xbf16> to vector<256x128xf32>
    %20 = vector.shape_cast %2 : vector<1x128xf32> to vector<128xf32>
    %21 = vector.shape_cast %20 : vector<128xf32> to vector<1x128xf32>
    %22 = vector.broadcast %21 : vector<1x128xf32> to vector<256x128xf32>
    %23 = arith.mulf %19, %22 : vector<256x128xf32>
    %cst_10 = arith.constant dense<0.000000e+00> : vector<256xf32>
    %24 = vector.multi_reduction <add>, %23, %cst_10 [1] : vector<256x128xf32> to vector<256xf32>
    %25 = vector.shape_cast %24 : vector<256xf32> to vector<256x1xf32>
    %26 = vector.broadcast %3 : vector<1x1xf32> to vector<256x1xf32>
    %27 = arith.addf %25, %26 : vector<256x1xf32>
    %c0_11 = arith.constant 0 : index
    %c0_12 = arith.constant 0 : index
    %28 = vector.load %arg6[%c0_11, %c0_12] : memref<256x1xf32, #tpu.memory_space<vmem>>, vector<256x1xf32>
    tpu.vector_store %arg6[%c0_11, %c0_12], %27 {strides = array<i32>} : memref<256x1xf32, #tpu.memory_space<vmem>>, vector<256x1xf32>,
    return
  }
  func.func @transform_0(%arg0: i32) -> (i32, i32) {
    %c0_i32 = arith.constant 0 : i32
    %c0_i32_0 = arith.constant 0 : i32
    return %arg0, %c0_i32 : i32, i32
  }
  func.func @transform_1(%arg0: i32) -> (i32, i32) {
    %c0_i32 = arith.constant 0 : i32
    %c0_i32_0 = arith.constant 0 : i32
    %c0_i32_1 = arith.constant 0 : i32
    return %c0_i32, %c0_i32_0 : i32, i32
  }
  func.func @transform_2(%arg0: i32) -> (i32, i32) {
    %c0_i32 = arith.constant 0 : i32
    %c0_i32_0 = arith.constant 0 : i32
    %c0_i32_1 = arith.constant 0 : i32
    return %c0_i32, %c0_i32_0 : i32, i32
  }
  func.func @transform_3(%arg0: i32) -> (i32, i32) {
    %c0_i32 = arith.constant 0 : i32
    %c0_i32_0 = arith.constant 0 : i32
    %c0_i32_1 = arith.constant 0 : i32
    return %c0_i32, %c0_i32_0 : i32, i32
  }
  func.func @transform_4(%arg0: i32) -> (i32, i32) {
    %c0_i32 = arith.constant 0 : i32
    %c0_i32_0 = arith.constant 0 : i32
    %c0_i32_1 = arith.constant 0 : i32
    return %c0_i32, %c0_i32_0 : i32, i32
  }
  func.func @transform_5(%arg0: i32) -> (i32, i32) {
    %c0_i32 = arith.constant 0 : i32
    %c0_i32_0 = arith.constant 0 : i32
    return %arg0, %c0_i32 : i32, i32
  }
}

</mosaic_0001>

<llo_original>
// kernel: tpu_custom_call.1
$region0: #{tpu_custom_call.1}
  #allocation0 [shape = 'u32[]', space=smem, size = 0x4, offset = 0x4, fixed_abs, tag = 'smem constant byte address 0x4 - core index']
  #allocation1 [shape = 'u32[144,128]{1,0:T(1,128)}', space=vmem, size = 0x12000, scoped, tag = 'internal scratch']
  #allocation2 [shape = 'f32[1,1]{1,0:T(1,128)S(1)}', space=vmem, size = 0x200, scoped, tag = 'scoped memory for tpu_custom_call.1']
  %s0 = inlined_call_operand.hbm [shape: f32[600,128], index: 0, kind: input, shape index: {}]
  %s1 = inlined_call_operand.hbm [shape: bf16[128,256], index: 1, kind: input, shape index: {}]
  %s2 = inlined_call_operand.hbm [shape: f32[1,256], index: 2, kind: input, shape index: {}]
  %s3 = inlined_call_operand.hbm [shape: f32[1,128], index: 3, kind: input, shape index: {}]
  %s4 = inlined_call_operand.<no memory space> [shape: f32[1,1], index: 4, kind: input, shape index: {}]
  %s5 = inlined_call_operand.hbm [shape: f32[600,1], index: 5, kind: output, shape index: {}]
  %s6 = sld [smem:[#allocation0]]
  $region69: #{tpu_custom_call.1} parent=0
    _
  %s8 = ssub.s32 1, %s6
  %s9 = scalar_select 0, %s8, %s6
  %v10 = vstv %s4
  %11 = vst [vmem:[#allocation2] sm:$0x1] %v10
  $region1: #{tpu_custom_call.1} parent=0
    #allocation3 [shape = 'u8[262144]{0}', space=vmem, size = 0x40000, scoped, tag = 'input window, operand 0']
    #allocation4 [shape = 's32[2]{0}', space=sflag, size = 0x8, scoped, tag = 'scoped memory for tpu_custom_call.1']
    #allocation5 [shape = 's32[2]{0}', space=sflag, size = 0x8, scoped, tag = 'scoped memory for tpu_custom_call.1']
    #allocation6 [shape = 'u8[65536]{0}', space=vmem, size = 0x10000, scoped, tag = 'input window, operand 1, single buffered']
    #allocation7 [shape = 's32[1]{0}', space=sflag, size = 0x4, scoped, tag = 'scoped memory for tpu_custom_call.1']
    #allocation8 [shape = 'u8[1024]{0}', space=vmem, size = 0x400, scoped, tag = 'input window, operand 2, single buffered']
    #allocation9 [shape = 'u8[512]{0}', space=vmem, size = 0x400, scoped, tag = 'input window, operand 3, single buffered']
    #allocation10 [shape = 's32[1]{0}', space=sflag, size = 0x4, scoped, tag = 'scoped memory for tpu_custom_call.1']
    #allocation11 [shape = 'u8[262144]{0}', space=vmem, size = 0x40000, scoped, tag = 'output window, operand 0']
    %12 = vsyncpa [#allocation4], 0
    %s13 = scalar_lea.sflag [#allocation4], 1
    %14 = vsyncpa %s13, 0
    %15 = vsyncpa [#allocation7], 0
    %16 = vsyncpa [#allocation10], 0
    %17 = vsyncpa [#allocation5], 0
    %s18 = scalar_lea.sflag [#allocation5], 1
    %19 = vsyncpa %s18, 0
    loop: start=0, step=1, limit=5
    $region2: #{tpu_custom_call.1} parent=1 // loop_pre_header
      _
    $region3: #{tpu_custom_call.1} parent=1 // loop_header
      %s21 = sphi 0, %s25
      %p22 = scmp.ge.s32.totalorder %s21, 5
      %s31 = sphi 0, %s33
      %s34 = sphi 0, %s31
      %s35 = sphi 0, %s34
      %s51 = sphi 0, %s35
      %s55 = sphi 0, %s55
      %s57 = sphi 0, %s55
      %s58 = sphi 0, %s57
      %s72 = sphi 0, %s58
      %s76 = sphi 0, %s76
      %s78 = sphi 0, %s76
      %s79 = sphi 0, %s78
      %s93 = sphi 0, %s79
      %s97 = sphi 0, %s97
      %s99 = sphi 0, %s97
      %s100 = sphi 0, %s99
      %s114 = sphi 0, %s100
      %s118 = sphi 0, %s118
      %s120 = sphi 0, %s118
      %s121 = sphi 0, %s120
      %s135 = sphi 0, %s121
      %s141 = sphi 0, %s143
      %s144 = sphi 0, %s141
      %s145 = sphi 0, %s144
      %s161 = sphi 0, %s145
    $region4: #{tpu_custom_call.1} parent=1 // loop_header_branch
      %24 = sbr.rel (%p22) target = $region8
    $region5: #{tpu_custom_call.1} parent=1 // loop_body
      %s26 = ssub.s32 %s21, 1
      %s27 = ssub.s32 %s21, 2
      %s28 = sadd.s32 %s21, 1
      %s29 = ssub.s32 %s21, %s28
      %p30 = scmp.eq.s32.totalorder %s29, 0
      %s32 = sadd.s32 %s31, 1
      %s33 = scalar_select %p30, %s31, %s32
      %p36 = pneg %p30
      %p37 = scmp.eq.s32.totalorder %s21, 2
      %p38 = por %p36, %p37
      %p39 = scmp.ne.s32.totalorder %s31, %s34
      %p40 = scmp.eq.s32.totalorder %s21, 0
      %p41 = por %p39, %p40
      %p42 = scmp.ne.s32.totalorder %s31, %s34
      %p43 = scmp.eq.s32.totalorder %s26, 2
      %p44 = por %p42, %p43
      %p45 = scmp.ne.s32.totalorder %s34, %s35
      %p46 = scmp.eq.s32.totalorder %s26, 0
      %p47 = por %p45, %p46
      %p48 = scmp.ne.s32.totalorder %s34, %s35
      %p49 = scmp.eq.s32.totalorder %s27, 2
      %p50 = por %p48, %p49
      %p52 = scmp.ne.s32.totalorder %s35, %s51
      %p53 = scmp.eq.s32.totalorder %s27, 0
      %p54 = por %p52, %p53
      %s56 = sadd.s32 %s55, 1
      %p59 = scmp.eq.s32.totalorder %s21, 2
      %p60 = scmp.ne.s32.totalorder %s55, %s57
      %p61 = scmp.eq.s32.totalorder %s21, 0
      %p62 = por %p60, %p61
      %p63 = scmp.ne.s32.totalorder %s55, %s57
      %p64 = scmp.eq.s32.totalorder %s26, 2
      %p65 = por %p63, %p64
      %p66 = scmp.ne.s32.totalorder %s57, %s58
      %p67 = scmp.eq.s32.totalorder %s26, 0
      %p68 = por %p66, %p67
      %p69 = scmp.ne.s32.totalorder %s57, %s58
      %p70 = scmp.eq.s32.totalorder %s27, 2
      %p71 = por %p69, %p70
      %p73 = scmp.ne.s32.totalorder %s58, %s72
      %p74 = scmp.eq.s32.totalorder %s27, 0
      %p75 = por %p73, %p74
      %s77 = sadd.s32 %s76, 1
      %p80 = scmp.eq.s32.totalorder %s21, 2
      %p81 = scmp.ne.s32.totalorder %s76, %s78
      %p82 = scmp.eq.s32.totalorder %s21, 0
      %p83 = por %p81, %p82
      %p84 = scmp.ne.s32.totalorder %s76, %s78
      %p85 = scmp.eq.s32.totalorder %s26, 2
      %p86 = por %p84, %p85
      %p87 = scmp.ne.s32.totalorder %s78, %s79
      %p88 = scmp.eq.s32.totalorder %s26, 0
      %p89 = por %p87, %p88
      %p90 = scmp.ne.s32.totalorder %s78, %s79
      %p91 = scmp.eq.s32.totalorder %s27, 2
      %p92 = por %p90, %p91
      %p94 = scmp.ne.s32.totalorder %s79, %s93
      %p95 = scmp.eq.s32.totalorder %s27, 0
      %p96 = por %p94, %p95
      %s98 = sadd.s32 %s97, 1
      %p101 = scmp.eq.s32.totalorder %s21, 2
      %p102 = scmp.ne.s32.totalorder %s97, %s99
      %p103 = scmp.eq.s32.totalorder %s21, 0
      %p104 = por %p102, %p103
      %p105 = scmp.ne.s32.totalorder %s97, %s99
      %p106 = scmp.eq.s32.totalorder %s26, 2
      %p107 = por %p105, %p106
      %p108 = scmp.ne.s32.totalorder %s99, %s100
      %p109 = scmp.eq.s32.totalorder %s26, 0
      %p110 = por %p108, %p109
      %p111 = scmp.ne.s32.totalorder %s99, %s100
      %p112 = scmp.eq.s32.totalorder %s27, 2
      %p113 = por %p111, %p112
      %p115 = scmp.ne.s32.totalorder %s100, %s114
      %p116 = scmp.eq.s32.totalorder %s27, 0
      %p117 = por %p115, %p116
      %s119 = sadd.s32 %s118, 1
      %p122 = scmp.eq.s32.totalorder %s21, 2
      %p123 = scmp.ne.s32.totalorder %s118, %s120
      %p124 = scmp.eq.s32.totalorder %s21, 0
      %p125 = por %p123, %p124
      %p126 = scmp.ne.s32.totalorder %s118, %s120
      %p127 = scmp.eq.s32.totalorder %s26, 2
      %p128 = por %p126, %p127
      %p129 = scmp.ne.s32.totalorder %s120, %s121
      %p130 = scmp.eq.s32.totalorder %s26, 0
      %p131 = por %p129, %p130
      %p132 = scmp.ne.s32.totalorder %s120, %s121
      %p133 = scmp.eq.s32.totalorder %s27, 2
      %p134 = por %p132, %p133
      %p136 = scmp.ne.s32.totalorder %s121, %s135
      %p137 = scmp.eq.s32.totalorder %s27, 0
      %p138 = por %p136, %p137
      %s139 = ssub.s32 %s21, %s28
      %p140 = scmp.eq.s32.totalorder %s139, 0
      %s142 = sadd.s32 %s141, 1
      %s143 = scalar_select %p140, %s141, %s142
      %p146 = pneg %p140
      %p147 = scmp.eq.s32.totalorder %s21, 2
      %p148 = por %p146, %p147
      %p149 = scmp.ne.s32.totalorder %s141, %s144
      %p150 = scmp.eq.s32.totalorder %s21, 0
      %p151 = por %p149, %p150
      %p152 = scmp.ne.s32.totalorder %s141, %s144
      %p153 = scmp.eq.s32.totalorder %s26, 2
      %p154 = por %p152, %p153
      %p155 = scmp.ne.s32.totalorder %s144, %s145
      %p156 = scmp.eq.s32.totalorder %s26, 0
      %p157 = por %p155, %p156
      %p158 = scmp.ne.s32.totalorder %s144, %s145
      %p159 = scmp.eq.s32.totalorder %s27, 2
      %p160 = por %p158, %p159
      %p162 = scmp.ne.s32.totalorder %s145, %s161
      %p163 = scmp.eq.s32.totalorder %s27, 0
      %p164 = por %p162, %p163
      %p165 = scmp.le.s32.totalorder 1, %s21
      %p166 = scmp.lt.s32.totalorder %s21, 4
      %p167 = pnand %p165, %p166
      %p168 = pneg %p167
      // Predicated region
      $region9: #{tpu_custom_call.1} parent=5 // pred_check
        _
      $region10: #{tpu_custom_call.1} parent=5 // pred_check_branch
        %170 = sbr.rel (%p167) target = $region12
      $region11: #{tpu_custom_call.1} parent=5 // pred_region
        %s171 = ssub.s32 %s21, 1
        // Predicated region
        $region13: #{tpu_custom_call.1} parent=11 // pred_check
          %p172 = pneg %p68
        $region14: #{tpu_custom_call.1} parent=11 // pred_check_branch
          %174 = sbr.rel (%p172) target = $region16
        $region15: #{tpu_custom_call.1} parent=11 // pred_region
          %s176 = ssub.s32 2048, 2048
          %177 = vsyncadd [#allocation7], %s176
          %s178 = sshll.u32 [#allocation6], 4
          %s179 = int_to_ptr.vmem [resolvable:$true] %s178
          %184 = dma.hbm_to_vmem [thread:$0]  %s1, 2048, %s179, [#allocation7], 128, 128, 8
        $region16: #{tpu_custom_call.1} parent=11 // pred_fallthru
          _
        // Predicated region
        $region17: #{tpu_custom_call.1} parent=11 // pred_check
          %p185 = pneg %p89
        $region18: #{tpu_custom_call.1} parent=11 // pred_check_branch
          %187 = sbr.rel (%p185) target = $region20
        $region19: #{tpu_custom_call.1} parent=11 // pred_region
          %s189 = ssub.s32 32, 32
          %190 = vsyncadd [#allocation7], %s189
          %s192 = sshll.u32 [#allocation8], 4
          %s193 = int_to_ptr.vmem [resolvable:$true] %s192
          %195 = dma.hbm_to_vmem [thread:$0]  %s2, 32, %s193, [#allocation7]
        $region20: #{tpu_custom_call.1} parent=11 // pred_fallthru
          _
        // Predicated region
        $region21: #{tpu_custom_call.1} parent=11 // pred_check
          %p196 = pneg %p110
        $region22: #{tpu_custom_call.1} parent=11 // pred_check_branch
          %198 = sbr.rel (%p196) target = $region24
        $region23: #{tpu_custom_call.1} parent=11 // pred_region
          %s200 = ssub.s32 16, 16
          %201 = vsyncadd [#allocation10], %s200
          %s203 = sshll.u32 [#allocation9], 4
          %s204 = int_to_ptr.vmem [resolvable:$true] %s203
          %206 = dma.hbm_to_vmem [thread:$0]  %s3, 16, %s204, [#allocation10]
        $region24: #{tpu_custom_call.1} parent=11 // pred_fallthru
          _
        // Predicated region
        $region25: #{tpu_custom_call.1} parent=11 // pred_check
          %p207 = pneg %p131
        $region26: #{tpu_custom_call.1} parent=11 // pred_check_branch
          %209 = sbr.rel (%p207) target = $region28
        $region27: #{tpu_custom_call.1} parent=11 // pred_region
          _
        $region28: #{tpu_custom_call.1} parent=11 // pred_fallthru
          _
      $region12: #{tpu_custom_call.1} parent=5 // pred_fallthru
        _
      %p210 = scmp.lt.s32.totalorder %s21, 3
      // Predicated region
      $region29: #{tpu_custom_call.1} parent=5 // pred_check
        %p211 = pneg %p210
      $region30: #{tpu_custom_call.1} parent=5 // pred_check_branch
        %213 = sbr.rel (%p211) target = $region32
      $region31: #{tpu_custom_call.1} parent=5 // pred_region
        // Predicated region
        $region33: #{tpu_custom_call.1} parent=31 // pred_check
          %p214 = pneg %p41
        $region34: #{tpu_custom_call.1} parent=31 // pred_check_branch
          %216 = sbr.rel (%p214) target = $region36
        $region35: #{tpu_custom_call.1} parent=31 // pred_region
          %s217 = sand.u32 %s31, 1
          %s218 = scalar_lea.sflag [#allocation4], %s217
          %s219 = sand.u32 %s31, 1
          %s220 = smul.addr %s219, 256
          %s221 = scalar_lea.vmem [#allocation3], %s220
          %s222 = smul.u32 32, %s21
          %s223 = ssub.s32 75, %s222
          %p224 = scmp.lt.s32.totalorder %s223, 32
          %s225 = scalar_select %p224, %s223, 32
          %s226 = smul.u32 128, %s225
          %s228 = ssub.s32 4096, %s226
          %229 = vsyncadd %s218, %s228
          %p230 = scmp.ne.s32.totalorder 0, %s226
          %s231 = smul.addr %s222, 128
          %s232 = scalar_lea.hbm %s0, %s231
          %s233 = smul.u32 8, %s225
          %s234 = sshll.u32 %s221, 4
          %s235 = int_to_ptr.vmem [resolvable:$true] %s234
          %s236 = sshll.u32 %s233, 4
          %240 = dma.hbm_to_vmem [thread:$0]  (%p230), %s232, %s236, %s235, %s218, 128, 128, 8
        $region36: #{tpu_custom_call.1} parent=31 // pred_fallthru
          _
      $region32: #{tpu_custom_call.1} parent=5 // pred_fallthru
        _
      %p241 = scmp.le.s32.totalorder 1, %s21
      %p242 = scmp.lt.s32.totalorder %s21, 4
      %p243 = pnand %p241, %p242
      %p244 = pneg %p243
      // Predicated region
      $region37: #{tpu_custom_call.1} parent=5 // pred_check
        _
      $region38: #{tpu_custom_call.1} parent=5 // pred_check_branch
        %246 = sbr.rel (%p243) target = $region40
      $region39: #{tpu_custom_call.1} parent=5 // pred_region
        %s247 = ssub.s32 %s21, 1
        %s248 = sand.u32 %s34, 1
        %s249 = scalar_lea.sflag [#allocation4], %s248
        %s250 = sand.u32 %s34, 1
        %s251 = smul.addr %s250, 256
        %s252 = scalar_lea.vmem [#allocation3], %s251
        // Predicated region
        $region41: #{tpu_custom_call.1} parent=39 // pred_check
          %p253 = pneg %p47
        $region42: #{tpu_custom_call.1} parent=39 // pred_check_branch
          %255 = sbr.rel (%p253) target = $region44
        $region43: #{tpu_custom_call.1} parent=39 // pred_region
          %256 = dma.done %s249, 4096
        $region44: #{tpu_custom_call.1} parent=39 // pred_fallthru
          _
        // Predicated region
        $region45: #{tpu_custom_call.1} parent=39 // pred_check
          %p257 = pneg %p68
        $region46: #{tpu_custom_call.1} parent=39 // pred_check_branch
          %259 = sbr.rel (%p257) target = $region48
        $region47: #{tpu_custom_call.1} parent=39 // pred_region
          %260 = dma.done [#allocation7], 2048
        $region48: #{tpu_custom_call.1} parent=39 // pred_fallthru
          _
        // Predicated region
        $region49: #{tpu_custom_call.1} parent=39 // pred_check
          %p261 = pneg %p89
        $region50: #{tpu_custom_call.1} parent=39 // pred_check_branch
          %263 = sbr.rel (%p261) target = $region52
        $region51: #{tpu_custom_call.1} parent=39 // pred_region
          %264 = dma.done [#allocation7], 32
        $region52: #{tpu_custom_call.1} parent=39 // pred_fallthru
          _
        // Predicated region
        $region53: #{tpu_custom_call.1} parent=39 // pred_check
          %p265 = pneg %p110
        $region54: #{tpu_custom_call.1} parent=39 // pred_check_branch
          %267 = sbr.rel (%p265) target = $region56
        $region55: #{tpu_custom_call.1} parent=39 // pred_region
          %268 = dma.done [#allocation10], 16
        $region56: #{tpu_custom_call.1} parent=39 // pred_fallthru
          _
        %s269 = sand.u32 %s34, 1
        %s270 = scalar_lea.sflag [#allocation4], %s269
        %s271 = sand.u32 %s34, 1
        %s272 = smul.addr %s271, 256
        %s273 = scalar_lea.vmem [#allocation3], %s272
        %p274 = pneg %p47
        %p275 = pneg %p44
        %p276 = pneg %p68
        %p277 = pneg %p65
        %p278 = pneg %p89
        %p279 = pneg %p86
        %p280 = pneg %p110
        %p281 = pneg %p107
        %p282 = pneg %p131
        %p283 = pneg %p128
        %p284 = pneg %p157
        %p285 = pneg %p154
        %s286 = sand.u32 %s144, 1
        %s287 = scalar_lea.sflag [#allocation5], %s286
        %s288 = sand.u32 %s144, 1
        %s289 = smul.addr %s288, 256
        %s290 = scalar_lea.vmem [#allocation11], %s289
        %s291 = smul.u32 32, %s26
        %s292 = ssub.s32 75, %s291
        %p293 = scmp.lt.s32.totalorder %s292, 32
        %s294 = scalar_select %p293, %s292, 32
        %s295 = smul.u32 128, %s294
        %s296 = smul.u32 32, %s26
        %s297 = ssub.s32 75, %s296
        %p298 = scmp.lt.s32.totalorder %s297, 32
        %s299 = scalar_select %p298, %s297, 32
        %s300 = smul.u32 128, %s299
        %v303 = vld [vmem:[#allocation6] sm:$0xff]
        %v304 = vld [vmem:[#allocation6 + $0x8] sm:$0xff]
        %v305 = vld [vmem:[#allocation6 + $0x10] sm:$0xff]
        %v306 = vld [vmem:[#allocation6 + $0x18] sm:$0xff]
        %v307 = vld [vmem:[#allocation6 + $0x20] sm:$0xff]
        %v308 = vld [vmem:[#allocation6 + $0x28] sm:$0xff]
        %v309 = vld [vmem:[#allocation6 + $0x30] sm:$0xff]
        %v310 = vld [vmem:[#allocation6 + $0x38] sm:$0xff]
        %v311 = vld [vmem:[#allocation6 + $0x40] sm:$0xff]
        %v312 = vld [vmem:[#allocation6 + $0x48] sm:$0xff]
        %v313 = vld [vmem:[#allocation6 + $0x50] sm:$0xff]
        %v314 = vld [vmem:[#allocation6 + $0x58] sm:$0xff]
        %v315 = vld [vmem:[#allocation6 + $0x60] sm:$0xff]
        %v316 = vld [vmem:[#allocation6 + $0x68] sm:$0xff]
        %v317 = vld [vmem:[#allocation6 + $0x70] sm:$0xff]
        %v318 = vld [vmem:[#allocation6 + $0x78] sm:$0xff]
        %v319 = vld [vmem:[#allocation8] sm:$0x3]
        %v320 = vld [vmem:[#allocation9] sm:$0x1]
        %v321 = vld [vmem:[#allocation2] sm:$0x1]
        %v322 = vld [vmem:[%s252] sm:$0xff]
        %v323 = vld [vmem:[%s252 + $0x8] sm:$0xff]
        %v324 = vld [vmem:[%s252 + $0x10] sm:$0xff]
        %v325 = vld [vmem:[%s252 + $0x18] sm:$0xff]
        %v326 = vld [vmem:[%s252 + $0x20] sm:$0xff]
        %v327 = vld [vmem:[%s252 + $0x28] sm:$0xff]
        %v328 = vld [vmem:[%s252 + $0x30] sm:$0xff]
        %v329 = vld [vmem:[%s252 + $0x38] sm:$0xff]
        %v330 = vld [vmem:[%s252 + $0x40] sm:$0xff]
        %v331 = vld [vmem:[%s252 + $0x48] sm:$0xff]
        %v332 = vld [vmem:[%s252 + $0x50] sm:$0xff]
        %v333 = vld [vmem:[%s252 + $0x58] sm:$0xff]
        %v334 = vld [vmem:[%s252 + $0x60] sm:$0xff]
        %v335 = vld [vmem:[%s252 + $0x68] sm:$0xff]
        %v336 = vld [vmem:[%s252 + $0x70] sm:$0xff]
        %v337 = vld [vmem:[%s252 + $0x78] sm:$0xff]
        %v338 = vld [vmem:[%s252 + $0x80] sm:$0xff]
        %v339 = vld [vmem:[%s252 + $0x88] sm:$0xff]
        %v340 = vld [vmem:[%s252 + $0x90] sm:$0xff]
        %v341 = vld [vmem:[%s252 + $0x98] sm:$0xff]
        %v342 = vld [vmem:[%s252 + $0xa0] sm:$0xff]
        %v343 = vld [vmem:[%s252 + $0xa8] sm:$0xff]
        %v344 = vld [vmem:[%s252 + $0xb0] sm:$0xff]
        %v345 = vld [vmem:[%s252 + $0xb8] sm:$0xff]
        %v346 = vld [vmem:[%s252 + $0xc0] sm:$0xff]
        %v347 = vld [vmem:[%s252 + $0xc8] sm:$0xff]
        %v348 = vld [vmem:[%s252 + $0xd0] sm:$0xff]
        %v349 = vld [vmem:[%s252 + $0xd8] sm:$0xff]
        %v350 = vld [vmem:[%s252 + $0xe0] sm:$0xff]
        %v351 = vld [vmem:[%s252 + $0xe8] sm:$0xff]
        %v352 = vld [vmem:[%s252 + $0xf0] sm:$0xff]
        %v353 = vld [vmem:[%s252 + $0xf8] sm:$0xff]
        %v354 = vpack.c.bf16 %v323, %v322
        %v355 = vpack.c.bf16 %v325, %v324
        %v356 = vpack.c.bf16 %v327, %v326
        %v357 = vpack.c.bf16 %v329, %v328
        %v358 = vpack.c.bf16 %v331, %v330
        %v359 = vpack.c.bf16 %v333, %v332
        %v360 = vpack.c.bf16 %v335, %v334
        %v361 = vpack.c.bf16 %v337, %v336
        %v362 = vpack.c.bf16 %v339, %v338
        %v363 = vpack.c.bf16 %v341, %v340
        %v364 = vpack.c.bf16 %v343, %v342
        %v365 = vpack.c.bf16 %v345, %v344
        %v366 = vpack.c.bf16 %v347, %v346
        %v367 = vpack.c.bf16 %v349, %v348
        %v368 = vpack.c.bf16 %v351, %v350
        %v369 = vpack.c.bf16 %v353, %v352
        %v371 = vlaneseq
        %v372 = vshrl.u32 %v371, 7
        %v373 = vsub.s32 0, %v372
        %v374 = vrot.slane %v319, %v373
        %v375 = vlaneseq
        %v376 = vshrl.u32 %v375, 7
        %v377 = vsub.s32 1, %v376
        %v378 = vrot.slane %v319, %v377
        %v397 = vunpack.c.l.b16 %v303
        %v398 = vunpack.c.h.b16 %v303
        %v399 = vunpack.c.l.b16 %v304
        %v400 = vunpack.c.h.b16 %v304
        %v401 = vunpack.c.l.b16 %v305
        %v402 = vunpack.c.h.b16 %v305
        %v403 = vunpack.c.l.b16 %v306
        %v404 = vunpack.c.h.b16 %v306
        %v405 = vunpack.c.l.b16 %v307
        %v406 = vunpack.c.h.b16 %v307
        %v407 = vunpack.c.l.b16 %v308
        %v408 = vunpack.c.h.b16 %v308
        %v409 = vunpack.c.l.b16 %v309
        %v410 = vunpack.c.h.b16 %v309
        %v411 = vunpack.c.l.b16 %v310
        %v412 = vunpack.c.h.b16 %v310
        %v413 = vunpack.c.l.b16 %v311
        %v414 = vunpack.c.h.b16 %v311
        %v415 = vunpack.c.l.b16 %v312
        %v416 = vunpack.c.h.b16 %v312
        %v417 = vunpack.c.l.b16 %v313
        %v418 = vunpack.c.h.b16 %v313
        %v419 = vunpack.c.l.b16 %v314
        %v420 = vunpack.c.h.b16 %v314
        %v421 = vunpack.c.l.b16 %v315
        %v422 = vunpack.c.h.b16 %v315
        %v423 = vunpack.c.l.b16 %v316
        %v424 = vunpack.c.h.b16 %v316
        %v425 = vunpack.c.l.b16 %v317
        %v426 = vunpack.c.h.b16 %v317
        %v427 = vunpack.c.l.b16 %v318
        %v428 = vunpack.c.h.b16 %v318
        %v429 = vpack.c.b16 %v399, %v397
        %v430 = vpack.c.b16 %v400, %v398
        %v431 = vpack.c.b16 %v403, %v401
        %v432 = vpack.c.b16 %v404, %v402
        %v433 = vpack.c.b16 %v407, %v405
        %v434 = vpack.c.b16 %v408, %v406
        %v435 = vpack.c.b16 %v411, %v409
        %v436 = vpack.c.b16 %v412, %v410
        %v437 = vpack.c.b16 %v415, %v413
        %v438 = vpack.c.b16 %v416, %v414
        %v439 = vpack.c.b16 %v419, %v417
        %v440 = vpack.c.b16 %v420, %v418
        %v441 = vpack.c.b16 %v423, %v421
        %v442 = vpack.c.b16 %v424, %v422
        %v443 = vpack.c.b16 %v427, %v425
        %v444 = vpack.c.b16 %v428, %v426
        %461 = vmatprep.subr.bf16.mxu0 %v430
        %462 = vmatpush1.bf16.msra.mxu0 %v429
        %463 = vmatprep.subr.bf16.mxu0 %v432
        %464 = vmatpush1.bf16.msra.mxu0 %v431
        %465 = vmatprep.subr.bf16.mxu0 %v434
        %466 = vmatpush1.bf16.msra.mxu0 %v433
        %467 = vmatprep.subr.bf16.mxu0 %v436
        %468 = vmatpush1.bf16.msra.mxu0 %v435
        %469 = vmatprep.subr.bf16.mxu0 %v438
        %470 = vmatpush1.bf16.msra.mxu0 %v437
        %471 = vmatprep.subr.bf16.mxu0 %v440
        %472 = vmatpush1.bf16.msra.mxu0 %v439
        %473 = vmatprep.subr.bf16.mxu0 %v442
        %474 = vmatpush1.bf16.msra.mxu0 %v441
        %475 = vmatprep.subr.bf16.mxu0 %v444
        %476 = vmatpush1.bf16.msra.mxu0 %v443
        %477 = vmatprep.subr.bf16.mxu0 0
        %478 = vmatpush1.bf16.msra.mxu0 0
        %479 = vmatprep.subr.bf16.mxu0 0
        %480 = vmatpush1.bf16.msra.mxu0 0
        %481 = vmatprep.subr.bf16.mxu0 0
        %482 = vmatpush1.bf16.msra.mxu0 0
        %483 = vmatprep.subr.bf16.mxu0 0
        %484 = vmatpush1.bf16.msra.mxu0 0
        %485 = vmatprep.subr.bf16.mxu0 0
        %486 = vmatpush1.bf16.msra.mxu0 0
        %487 = vmatprep.subr.bf16.mxu0 0
        %488 = vmatpush1.bf16.msra.mxu0 0
        %489 = vmatprep.subr.bf16.mxu0 0
        %490 = vmatpush1.bf16.msra.mxu0 0
        %491 = vmatprep.subr.bf16.mxu0 0
        %492 = vmatpush1.bf16.msra.mxu0 0
        %493 = vmatprep.mubr.bf16.mxu0 0
        %494 = vmatmul.mubr.bf16.gmra.mrb[0].mxu0 %v354
        %v495 = vpop.f32.mrb[0].mxu0
        %v496 = vadd.f32 %v374, %v495
        %v497 = vpop.f32.mrb[0].mxu0
        %v498 = vadd.f32 %v378, %v497
        %v499 = vpop.f32.mrb[0].mxu0
        %v500 = vadd.f32 %v374, %v499
        %v501 = vpop.f32.mrb[0].mxu0
        %v502 = vadd.f32 %v378, %v501
        %503 = vmatprep.mubr.bf16.mxu0 0
        %504 = vmatmul.mubr.bf16.gmra.mrb[0].mxu0 %v355
        %v505 = vpop.f32.mrb[0].mxu0
        %v506 = vadd.f32 %v374, %v505
        %v507 = vpop.f32.mrb[0].mxu0
        %v508 = vadd.f32 %v378, %v507
        %v509 = vpop.f32.mrb[0].mxu0
        %v510 = vadd.f32 %v374, %v509
        %v511 = vpop.f32.mrb[0].mxu0
        %v512 = vadd.f32 %v378, %v511
        %513 = vmatprep.mubr.bf16.mxu0 0
        %514 = vmatmul.mubr.bf16.gmra.mrb[0].mxu0 %v356
        %v515 = vpop.f32.mrb[0].mxu0
        %v516 = vadd.f32 %v374, %v515
        %v517 = vpop.f32.mrb[0].mxu0
        %v518 = vadd.f32 %v378, %v517
        %v519 = vpop.f32.mrb[0].mxu0
        %v520 = vadd.f32 %v374, %v519
        %v521 = vpop.f32.mrb[0].mxu0
        %v522 = vadd.f32 %v378, %v521
        %523 = vmatprep.mubr.bf16.mxu0 0
        %524 = vmatmul.mubr.bf16.gmra.mrb[0].mxu0 %v357
        %v525 = vpop.f32.mrb[0].mxu0
        %v526 = vadd.f32 %v374, %v525
        %v527 = vpop.f32.mrb[0].mxu0
        %v528 = vadd.f32 %v378, %v527
        %v529 = vpop.f32.mrb[0].mxu0
        %v530 = vadd.f32 %v374, %v529
        %v531 = vpop.f32.mrb[0].mxu0
        %v532 = vadd.f32 %v378, %v531
        %533 = vmatprep.mubr.bf16.mxu0 0
        %534 = vmatmul.mubr.bf16.gmra.mrb[0].mxu0 %v358
        %v535 = vpop.f32.mrb[0].mxu0
        %v536 = vadd.f32 %v374, %v535
        %v537 = vpop.f32.mrb[0].mxu0
        %v538 = vadd.f32 %v378, %v537
        %v539 = vpop.f32.mrb[0].mxu0
        %v540 = vadd.f32 %v374, %v539
        %v541 = vpop.f32.mrb[0].mxu0
        %v542 = vadd.f32 %v378, %v541
        %543 = vmatprep.mubr.bf16.mxu0 0
        %544 = vmatmul.mubr.bf16.gmra.mrb[0].mxu0 %v359
        %v545 = vpop.f32.mrb[0].mxu0
        %v546 = vadd.f32 %v374, %v545
        %v547 = vpop.f32.mrb[0].mxu0
        %v548 = vadd.f32 %v378, %v547
        %v549 = vpop.f32.mrb[0].mxu0
        %v550 = vadd.f32 %v374, %v549
        %v551 = vpop.f32.mrb[0].mxu0
        %v552 = vadd.f32 %v378, %v551
        %553 = vmatprep.mubr.bf16.mxu0 0
        %554 = vmatmul.mubr.bf16.gmra.mrb[0].mxu0 %v360
        %v555 = vpop.f32.mrb[0].mxu0
        %v556 = vadd.f32 %v374, %v555
        %v557 = vpop.f32.mrb[0].mxu0
        %v558 = vadd.f32 %v378, %v557
        %v559 = vpop.f32.mrb[0].mxu0
        %v560 = vadd.f32 %v374, %v559
        %v561 = vpop.f32.mrb[0].mxu0
        %v562 = vadd.f32 %v378, %v561
        %563 = vmatprep.mubr.bf16.mxu0 0
        %564 = vmatmul.mubr.bf16.gmra.mrb[0].mxu0 %v361
        %v565 = vpop.f32.mrb[0].mxu0
        %v566 = vadd.f32 %v374, %v565
        %v567 = vpop.f32.mrb[0].mxu0
        %v568 = vadd.f32 %v378, %v567
        %v569 = vpop.f32.mrb[0].mxu0
        %v570 = vadd.f32 %v374, %v569
        %v571 = vpop.f32.mrb[0].mxu0
        %v572 = vadd.f32 %v378, %v571
        %573 = vmatprep.mubr.bf16.mxu0 0
        %574 = vmatmul.mubr.bf16.gmra.mrb[0].mxu0 %v362
        %v575 = vpop.f32.mrb[0].mxu0
        %v576 = vadd.f32 %v374, %v575
        %v577 = vpop.f32.mrb[0].mxu0
        %v578 = vadd.f32 %v378, %v577
        %v579 = vpop.f32.mrb[0].mxu0
        %v580 = vadd.f32 %v374, %v579
        %v581 = vpop.f32.mrb[0].mxu0
        %v582 = vadd.f32 %v378, %v581
        %583 = vmatprep.mubr.bf16.mxu0 0
        %584 = vmatmul.mubr.bf16.gmra.mrb[0].mxu0 %v363
        %v585 = vpop.f32.mrb[0].mxu0
        %v586 = vadd.f32 %v374, %v585
        %v587 = vpop.f32.mrb[0].mxu0
        %v588 = vadd.f32 %v378, %v587
        %v589 = vpop.f32.mrb[0].mxu0
        %v590 = vadd.f32 %v374, %v589
        %v591 = vpop.f32.mrb[0].mxu0
        %v592 = vadd.f32 %v378, %v591
        %593 = vmatprep.mubr.bf16.mxu0 0
        %594 = vmatmul.mubr.bf16.gmra.mrb[0].mxu0 %v364
        %v595 = vpop.f32.mrb[0].mxu0
        %v596 = vadd.f32 %v374, %v595
        %v597 = vpop.f32.mrb[0].mxu0
        %v598 = vadd.f32 %v378, %v597
        %v599 = vpop.f32.mrb[0].mxu0
        %v600 = vadd.f32 %v374, %v599
        %v601 = vpop.f32.mrb[0].mxu0
        %v602 = vadd.f32 %v378, %v601
        %603 = vmatprep.mubr.bf16.mxu0 0
        %604 = vmatmul.mubr.bf16.gmra.mrb[0].mxu0 %v365
        %v605 = vpop.f32.mrb[0].mxu0
        %v606 = vadd.f32 %v374, %v605
        %v607 = vpop.f32.mrb[0].mxu0
        %v608 = vadd.f32 %v378, %v607
        %v609 = vpop.f32.mrb[0].mxu0
        %v610 = vadd.f32 %v374, %v609
        %v611 = vpop.f32.mrb[0].mxu0
        %v612 = vadd.f32 %v378, %v611
        %613 = vmatprep.mubr.bf16.mxu0 0
        %614 = vmatmul.mubr.bf16.gmra.mrb[0].mxu0 %v366
        %v615 = vpop.f32.mrb[0].mxu0
        %v616 = vadd.f32 %v374, %v615
        %v617 = vpop.f32.mrb[0].mxu0
        %v618 = vadd.f32 %v378, %v617
        %v619 = vpop.f32.mrb[0].mxu0
        %v620 = vadd.f32 %v374, %v619
        %v621 = vpop.f32.mrb[0].mxu0
        %v622 = vadd.f32 %v378, %v621
        %623 = vmatprep.mubr.bf16.mxu0 0
        %624 = vmatmul.mubr.bf16.gmra.mrb[0].mxu0 %v367
        %v625 = vpop.f32.mrb[0].mxu0
        %v626 = vadd.f32 %v374, %v625
        %v627 = vpop.f32.mrb[0].mxu0
        %v628 = vadd.f32 %v378, %v627
        %v629 = vpop.f32.mrb[0].mxu0
        %v630 = vadd.f32 %v374, %v629
        %v631 = vpop.f32.mrb[0].mxu0
        %v632 = vadd.f32 %v378, %v631
        %633 = vmatprep.mubr.bf16.mxu0 0
        %634 = vmatmul.mubr.bf16.gmra.mrb[0].mxu0 %v368
        %v635 = vpop.f32.mrb[0].mxu0
        %v636 = vadd.f32 %v374, %v635
        %v637 = vpop.f32.mrb[0].mxu0
        %v638 = vadd.f32 %v378, %v637
        %v639 = vpop.f32.mrb[0].mxu0
        %v640 = vadd.f32 %v374, %v639
        %v641 = vpop.f32.mrb[0].mxu0
        %v642 = vadd.f32 %v378, %v641
        %643 = vmatprep.mubr.bf16.mxu0 0
        %644 = vmatmul.mubr.bf16.gmra.mrb[0].mxu0 %v369
        %v645 = vpop.f32.mrb[0].mxu0
        %v646 = vadd.f32 %v374, %v645
        %v647 = vpop.f32.mrb[0].mxu0
        %v648 = vadd.f32 %v378, %v647
        %v649 = vpop.f32.mrb[0].mxu0
        %v650 = vadd.f32 %v374, %v649
        %v651 = vpop.f32.mrb[0].mxu0
        %v652 = vadd.f32 %v378, %v651
        %653 = vdwg.mxu0
        %v654 = vpack.c.bf16 %v500, %v496
        %v655 = vpack.c.bf16 %v502, %v498
        %v656 = vpack.c.bf16 %v510, %v506
        %v657 = vpack.c.bf16 %v512, %v508
        %v658 = vpack.c.bf16 %v520, %v516
        %v659 = vpack.c.bf16 %v522, %v518
        %v660 = vpack.c.bf16 %v530, %v526
        %v661 = vpack.c.bf16 %v532, %v528
        %v662 = vpack.c.bf16 %v540, %v536
        %v663 = vpack.c.bf16 %v542, %v538
        %v664 = vpack.c.bf16 %v550, %v546
        %v665 = vpack.c.bf16 %v552, %v548
        %v666 = vpack.c.bf16 %v560, %v556
        %v667 = vpack.c.bf16 %v562, %v558
        %v668 = vpack.c.bf16 %v570, %v566
        %v669 = vpack.c.bf16 %v572, %v568
        %v670 = vpack.c.bf16 %v580, %v576
        %v671 = vpack.c.bf16 %v582, %v578
        %v672 = vpack.c.bf16 %v590, %v586
        %v673 = vpack.c.bf16 %v592, %v588
        %v674 = vpack.c.bf16 %v600, %v596
        %v675 = vpack.c.bf16 %v602, %v598
        %v676 = vpack.c.bf16 %v610, %v606
        %v677 = vpack.c.bf16 %v612, %v608
        %v678 = vpack.c.bf16 %v620, %v616
        %v679 = vpack.c.bf16 %v622, %v618
        %v680 = vpack.c.bf16 %v630, %v626
        %v681 = vpack.c.bf16 %v632, %v628
        %v682 = vpack.c.bf16 %v640, %v636
        %v683 = vpack.c.bf16 %v642, %v638
        %v684 = vpack.c.bf16 %v650, %v646
        %v685 = vpack.c.bf16 %v652, %v648
        %v686 = vtanh.bf16.pop %v654
        %v687 = vtanh.bf16.pop %v656
        %v688 = vtanh.bf16.pop %v658
        %v689 = vtanh.bf16.pop %v660
        %v690 = vtanh.bf16.pop %v662
        %v691 = vtanh.bf16.pop %v664
        %v692 = vtanh.bf16.pop %v666
        %v693 = vtanh.bf16.pop %v668
        %v694 = vtanh.bf16.pop %v670
        %v695 = vtanh.bf16.pop %v672
        %v696 = vtanh.bf16.pop %v674
        %v697 = vtanh.bf16.pop %v676
        %v698 = vtanh.bf16.pop %v678
        %v699 = vtanh.bf16.pop %v680
        %v700 = vtanh.bf16.pop %v682
        %v701 = vtanh.bf16.pop %v684
        %v702 = vxor.u32 %v655, 2147516416
        %v703 = vxor.u32 %v657, 2147516416
        %v704 = vxor.u32 %v659, 2147516416
        %v705 = vxor.u32 %v661, 2147516416
        %v706 = vxor.u32 %v663, 2147516416
        %v707 = vxor.u32 %v665, 2147516416
        %v708 = vxor.u32 %v667, 2147516416
        %v709 = vxor.u32 %v669, 2147516416
        %v710 = vxor.u32 %v671, 2147516416
        %v711 = vxor.u32 %v673, 2147516416
        %v712 = vxor.u32 %v675, 2147516416
        %v713 = vxor.u32 %v677, 2147516416
        %v714 = vxor.u32 %v679, 2147516416
        %v715 = vxor.u32 %v681, 2147516416
        %v716 = vxor.u32 %v683, 2147516416
        %v717 = vxor.u32 %v685, 2147516416
        %v719 = vmul.bf16 %v702, 1069105081
        %v720 = vpow.bf16.pop %v719
        %v722 = vmul.bf16 %v703, 1069105081
        %v723 = vpow.bf16.pop %v722
        %v725 = vmul.bf16 %v704, 1069105081
        %v726 = vpow.bf16.pop %v725
        %v728 = vmul.bf16 %v705, 1069105081
        %v729 = vpow.bf16.pop %v728
        %v731 = vmul.bf16 %v706, 1069105081
        %v732 = vpow.bf16.pop %v731
        %v734 = vmul.bf16 %v707, 1069105081
        %v735 = vpow.bf16.pop %v734
        %v737 = vmul.bf16 %v708, 1069105081
        %v738 = vpow.bf16.pop %v737
        %v740 = vmul.bf16 %v709, 1069105081
        %v741 = vpow.bf16.pop %v740
        %v743 = vmul.bf16 %v710, 1069105081
        %v744 = vpow.bf16.pop %v743
        %v746 = vmul.bf16 %v711, 1069105081
        %v747 = vpow.bf16.pop %v746
        %v749 = vmul.bf16 %v712, 1069105081
        %v750 = vpow.bf16.pop %v749
        %v752 = vmul.bf16 %v713, 1069105081
        %v753 = vpow.bf16.pop %v752
        %v755 = vmul.bf16 %v714, 1069105081
        %v756 = vpow.bf16.pop %v755
        %v758 = vmul.bf16 %v715, 1069105081
        %v759 = vpow.bf16.pop %v758
        %v761 = vmul.bf16 %v716, 1069105081
        %v762 = vpow.bf16.pop %v761
        %v764 = vmul.bf16 %v717, 1069105081
        %v765 = vpow.bf16.pop %v764
        %v766 = vadd.bf16 %v720, 1065369472
        %v767 = vadd.bf16 %v723, 1065369472
        %v768 = vadd.bf16 %v726, 1065369472
        %v769 = vadd.bf16 %v729, 1065369472
        %v770 = vadd.bf16 %v732, 1065369472
        %v771 = vadd.bf16 %v735, 1065369472
        %v772 = vadd.bf16 %v738, 1065369472
        %v773 = vadd.bf16 %v741, 1065369472
        %v774 = vadd.bf16 %v744, 1065369472
        %v775 = vadd.bf16 %v747, 1065369472
        %v776 = vadd.bf16 %v750, 1065369472
        %v777 = vadd.bf16 %v753, 1065369472
        %v778 = vadd.bf16 %v756, 1065369472
        %v779 = vadd.bf16 %v759, 1065369472
        %v780 = vadd.bf16 %v762, 1065369472
        %v781 = vadd.bf16 %v765, 1065369472
        %v782 = vrcp.bf16.pop %v766
        %v783 = vmul.bf16 1065369472, %v782
        %v784 = vrcp.bf16.pop %v767
        %v785 = vmul.bf16 1065369472, %v784
        %v786 = vrcp.bf16.pop %v768
        %v787 = vmul.bf16 1065369472, %v786
        %v788 = vrcp.bf16.pop %v769
        %v789 = vmul.bf16 1065369472, %v788
        %v790 = vrcp.bf16.pop %v770
        %v791 = vmul.bf16 1065369472, %v790
        %v792 = vrcp.bf16.pop %v771
        %v793 = vmul.bf16 1065369472, %v792
        %v794 = vrcp.bf16.pop %v772
        %v795 = vmul.bf16 1065369472, %v794
        %v796 = vrcp.bf16.pop %v773
        %v797 = vmul.bf16 1065369472, %v796
        %v798 = vrcp.bf16.pop %v774
        %v799 = vmul.bf16 1065369472, %v798
        %v800 = vrcp.bf16.pop %v775
        %v801 = vmul.bf16 1065369472, %v800
        %v802 = vrcp.bf16.pop %v776
        %v803 = vmul.bf16 1065369472, %v802
        %v804 = vrcp.bf16.pop %v777
        %v805 = vmul.bf16 1065369472, %v804
        %v806 = vrcp.bf16.pop %v778
        %v807 = vmul.bf16 1065369472, %v806
        %v808 = vrcp.bf16.pop %v779
        %v809 = vmul.bf16 1065369472, %v808
        %v810 = vrcp.bf16.pop %v780
        %v811 = vmul.bf16 1065369472, %v810
        %v812 = vrcp.bf16.pop %v781
        %v813 = vmul.bf16 1065369472, %v812
        %v814 = vmul.bf16 %v686, %v783
        %v815 = vmul.bf16 %v687, %v785
        %v816 = vmul.bf16 %v688, %v787
        %v817 = vmul.bf16 %v689, %v789
        %v818 = vmul.bf16 %v690, %v791
        %v819 = vmul.bf16 %v691, %v793
        %v820 = vmul.bf16 %v692, %v795
        %v821 = vmul.bf16 %v693, %v797
        %v822 = vmul.bf16 %v694, %v799
        %v823 = vmul.bf16 %v695, %v801
        %v824 = vmul.bf16 %v696, %v803
        %v825 = vmul.bf16 %v697, %v805
        %v826 = vmul.bf16 %v698, %v807
        %v827 = vmul.bf16 %v699, %v809
        %v828 = vmul.bf16 %v700, %v811
        %v829 = vmul.bf16 %v701, %v813
        %v830 = vunpack.c.l.bf16 %v814
        %v831 = vunpack.c.h.bf16 %v814
        %v832 = vunpack.c.l.bf16 %v815
        %v833 = vunpack.c.h.bf16 %v815
        %v834 = vunpack.c.l.bf16 %v816
        %v835 = vunpack.c.h.bf16 %v816
        %v836 = vunpack.c.l.bf16 %v817
        %v837 = vunpack.c.h.bf16 %v817
        %v838 = vunpack.c.l.bf16 %v818
        %v839 = vunpack.c.h.bf16 %v818
        %v840 = vunpack.c.l.bf16 %v819
        %v841 = vunpack.c.h.bf16 %v819
        %v842 = vunpack.c.l.bf16 %v820
        %v843 = vunpack.c.h.bf16 %v820
        %v844 = vunpack.c.l.bf16 %v821
        %v845 = vunpack.c.h.bf16 %v821
        %v846 = vunpack.c.l.bf16 %v822
        %v847 = vunpack.c.h.bf16 %v822
        %v848 = vunpack.c.l.bf16 %v823
        %v849 = vunpack.c.h.bf16 %v823
        %v850 = vunpack.c.l.bf16 %v824
        %v851 = vunpack.c.h.bf16 %v824
        %v852 = vunpack.c.l.bf16 %v825
        %v853 = vunpack.c.h.bf16 %v825
        %v854 = vunpack.c.l.bf16 %v826
        %v855 = vunpack.c.h.bf16 %v826
        %v856 = vunpack.c.l.bf16 %v827
        %v857 = vunpack.c.h.bf16 %v827
        %v858 = vunpack.c.l.bf16 %v828
        %v859 = vunpack.c.h.bf16 %v828
        %v860 = vunpack.c.l.bf16 %v829
        %v861 = vunpack.c.h.bf16 %v829
        %v863 = vlaneseq
        %v864 = vshrl.u32 %v863, 7
        %v865 = vsub.s32 0, %v864
        %v866 = vrot.slane %v320, %v865
        %v868 = vmul.f32 %v830, %v866
        %v869 = vmul.f32 %v831, %v866
        %v870 = vmul.f32 %v832, %v866
        %v871 = vmul.f32 %v833, %v866
        %v872 = vmul.f32 %v834, %v866
        %v873 = vmul.f32 %v835, %v866
        %v874 = vmul.f32 %v836, %v866
        %v875 = vmul.f32 %v837, %v866
        %v876 = vmul.f32 %v838, %v866
        %v877 = vmul.f32 %v839, %v866
        %v878 = vmul.f32 %v840, %v866
        %v879 = vmul.f32 %v841, %v866
        %v880 = vmul.f32 %v842, %v866
        %v881 = vmul.f32 %v843, %v866
        %v882 = vmul.f32 %v844, %v866
        %v883 = vmul.f32 %v845, %v866
        %v884 = vmul.f32 %v846, %v866
        %v885 = vmul.f32 %v847, %v866
        %v886 = vmul.f32 %v848, %v866
        %v887 = vmul.f32 %v849, %v866
        %v888 = vmul.f32 %v850, %v866
        %v889 = vmul.f32 %v851, %v866
        %v890 = vmul.f32 %v852, %v866
        %v891 = vmul.f32 %v853, %v866
        %v892 = vmul.f32 %v854, %v866
        %v893 = vmul.f32 %v855, %v866
        %v894 = vmul.f32 %v856, %v866
        %v895 = vmul.f32 %v857, %v866
        %v896 = vmul.f32 %v858, %v866
        %v897 = vmul.f32 %v859, %v866
        %v898 = vmul.f32 %v860, %v866
        %v899 = vmul.f32 %v861, %v866
        %900 = vadd.xlane.f32.xlu0 %v868
        %v901 = vpop.xlane.xlu0 %900
        %902 = vadd.xlane.f32.xlu0 %v869
        %v903 = vpop.xlane.xlu0 %902
        %904 = vadd.xlane.f32.xlu0 %v870
        %v905 = vpop.xlane.xlu0 %904
        %906 = vadd.xlane.f32.xlu0 %v871
        %v907 = vpop.xlane.xlu0 %906
        %908 = vadd.xlane.f32.xlu0 %v872
        %v909 = vpop.xlane.xlu0 %908
        %910 = vadd.xlane.f32.xlu0 %v873
        %v911 = vpop.xlane.xlu0 %910
        %912 = vadd.xlane.f32.xlu0 %v874
        %v913 = vpop.xlane.xlu0 %912
        %914 = vadd.xlane.f32.xlu0 %v875
        %v915 = vpop.xlane.xlu0 %914
        %916 = vadd.xlane.f32.xlu0 %v876
        %v917 = vpop.xlane.xlu0 %916
        %918 = vadd.xlane.f32.xlu0 %v877
        %v919 = vpop.xlane.xlu0 %918
        %920 = vadd.xlane.f32.xlu0 %v878
        %v921 = vpop.xlane.xlu0 %920
        %922 = vadd.xlane.f32.xlu0 %v879
        %v923 = vpop.xlane.xlu0 %922
        %924 = vadd.xlane.f32.xlu0 %v880
        %v925 = vpop.xlane.xlu0 %924
        %926 = vadd.xlane.f32.xlu0 %v881
        %v927 = vpop.xlane.xlu0 %926
        %928 = vadd.xlane.f32.xlu0 %v882
        %v929 = vpop.xlane.xlu0 %928
        %930 = vadd.xlane.f32.xlu0 %v883
        %v931 = vpop.xlane.xlu0 %930
        %932 = vadd.xlane.f32.xlu0 %v884
        %v933 = vpop.xlane.xlu0 %932
        %934 = vadd.xlane.f32.xlu0 %v885
        %v935 = vpop.xlane.xlu0 %934
        %936 = vadd.xlane.f32.xlu0 %v886
        %v937 = vpop.xlane.xlu0 %936
        %938 = vadd.xlane.f32.xlu0 %v887
        %v939 = vpop.xlane.xlu0 %938
        %940 = vadd.xlane.f32.xlu0 %v888
        %v941 = vpop.xlane.xlu0 %940
        %942 = vadd.xlane.f32.xlu0 %v889
        %v943 = vpop.xlane.xlu0 %942
        %944 = vadd.xlane.f32.xlu0 %v890
        %v945 = vpop.xlane.xlu0 %944
        %946 = vadd.xlane.f32.xlu0 %v891
        %v947 = vpop.xlane.xlu0 %946
        %948 = vadd.xlane.f32.xlu0 %v892
        %v949 = vpop.xlane.xlu0 %948
        %950 = vadd.xlane.f32.xlu0 %v893
        %v951 = vpop.xlane.xlu0 %950
        %952 = vadd.xlane.f32.xlu0 %v894
        %v953 = vpop.xlane.xlu0 %952
        %954 = vadd.xlane.f32.xlu0 %v895
        %v955 = vpop.xlane.xlu0 %954
        %956 = vadd.xlane.f32.xlu0 %v896
        %v957 = vpop.xlane.xlu0 %956
        %958 = vadd.xlane.f32.xlu0 %v897
        %v959 = vpop.xlane.xlu0 %958
        %960 = vadd.xlane.f32.xlu0 %v898
        %v961 = vpop.xlane.xlu0 %960
        %962 = vadd.xlane.f32.xlu0 %v899
        %v963 = vpop.xlane.xlu0 %962
        %v965 = vlaneseq
        %v966 = vshrl.u32 %v965, 7
        %v967 = vsub.s32 0, %v966
        %v968 = vrot.slane %v321, %v967
        %v970 = vadd.f32 %v901, %v968
        %v971 = vadd.f32 %v903, %v968
        %v972 = vadd.f32 %v905, %v968
        %v973 = vadd.f32 %v907, %v968
        %v974 = vadd.f32 %v909, %v968
        %v975 = vadd.f32 %v911, %v968
        %v976 = vadd.f32 %v913, %v968
        %v977 = vadd.f32 %v915, %v968
        %v978 = vadd.f32 %v917, %v968
        %v979 = vadd.f32 %v919, %v968
        %v980 = vadd.f32 %v921, %v968
        %v981 = vadd.f32 %v923, %v968
        %v982 = vadd.f32 %v925, %v968
        %v983 = vadd.f32 %v927, %v968
        %v984 = vadd.f32 %v929, %v968
        %v985 = vadd.f32 %v931, %v968
        %v986 = vadd.f32 %v933, %v968
        %v987 = vadd.f32 %v935, %v968
        %v988 = vadd.f32 %v937, %v968
        %v989 = vadd.f32 %v939, %v968
        %v990 = vadd.f32 %v941, %v968
        %v991 = vadd.f32 %v943, %v968
        %v992 = vadd.f32 %v945, %v968
        %v993 = vadd.f32 %v947, %v968
        %v994 = vadd.f32 %v949, %v968
        %v995 = vadd.f32 %v951, %v968
        %v996 = vadd.f32 %v953, %v968
        %v997 = vadd.f32 %v955, %v968
        %v998 = vadd.f32 %v957, %v968
        %v999 = vadd.f32 %v959, %v968
        %v1000 = vadd.f32 %v961, %v968
        %v1001 = vadd.f32 %v963, %v968
        %vm1002 = vcmask 7168
        %1003 = vst.msk [vmem:[%s290] sm:$0xff] %vm1002, %v970
        %1004 = vst.msk [vmem:[%s290 + $0x8] sm:$0xff] %vm1002, %v971
        %1005 = vst.msk [vmem:[%s290 + $0x10] sm:$0xff] %vm1002, %v972
        %1006 = vst.msk [vmem:[%s290 + $0x18] sm:$0xff] %vm1002, %v973
        %1007 = vst.msk [vmem:[%s290 + $0x20] sm:$0xff] %vm1002, %v974
        %1008 = vst.msk [vmem:[%s290 + $0x28] sm:$0xff] %vm1002, %v975
        %1009 = vst.msk [vmem:[%s290 + $0x30] sm:$0xff] %vm1002, %v976
        %1010 = vst.msk [vmem:[%s290 + $0x38] sm:$0xff] %vm1002, %v977
        %1011 = vst.msk [vmem:[%s290 + $0x40] sm:$0xff] %vm1002, %v978
        %1012 = vst.msk [vmem:[%s290 + $0x48] sm:$0xff] %vm1002, %v979
        %1013 = vst.msk [vmem:[%s290 + $0x50] sm:$0xff] %vm1002, %v980
        %1014 = vst.msk [vmem:[%s290 + $0x58] sm:$0xff] %vm1002, %v981
        %1015 = vst.msk [vmem:[%s290 + $0x60] sm:$0xff] %vm1002, %v982
        %1016 = vst.msk [vmem:[%s290 + $0x68] sm:$0xff] %vm1002, %v983
        %1017 = vst.msk [vmem:[%s290 + $0x70] sm:$0xff] %vm1002, %v984
        %1018 = vst.msk [vmem:[%s290 + $0x78] sm:$0xff] %vm1002, %v985
        %1019 = vst.msk [vmem:[%s290 + $0x80] sm:$0xff] %vm1002, %v986
        %1020 = vst.msk [vmem:[%s290 + $0x88] sm:$0xff] %vm1002, %v987
        %1021 = vst.msk [vmem:[%s290 + $0x90] sm:$0xff] %vm1002, %v988
        %1022 = vst.msk [vmem:[%s290 + $0x98] sm:$0xff] %vm1002, %v989
        %1023 = vst.msk [vmem:[%s290 + $0xa0] sm:$0xff] %vm1002, %v990
        %1024 = vst.msk [vmem:[%s290 + $0xa8] sm:$0xff] %vm1002, %v991
        %1025 = vst.msk [vmem:[%s290 + $0xb0] sm:$0xff] %vm1002, %v992
        %1026 = vst.msk [vmem:[%s290 + $0xb8] sm:$0xff] %vm1002, %v993
        %1027 = vst.msk [vmem:[%s290 + $0xc0] sm:$0xff] %vm1002, %v994
        %1028 = vst.msk [vmem:[%s290 + $0xc8] sm:$0xff] %vm1002, %v995
        %1029 = vst.msk [vmem:[%s290 + $0xd0] sm:$0xff] %vm1002, %v996
        %1030 = vst.msk [vmem:[%s290 + $0xd8] sm:$0xff] %vm1002, %v997
        %1031 = vst.msk [vmem:[%s290 + $0xe0] sm:$0xff] %vm1002, %v998
        %1032 = vst.msk [vmem:[%s290 + $0xe8] sm:$0xff] %vm1002, %v999
        %1033 = vst.msk [vmem:[%s290 + $0xf0] sm:$0xff] %vm1002, %v1000
        %1034 = vst.msk [vmem:[%s290 + $0xf8] sm:$0xff] %vm1002, %v1001
        %s1035 = sand.u32 %s144, 1
        %s1036 = scalar_lea.sflag [#allocation5], %s1035
        %s1037 = sand.u32 %s144, 1
        %s1038 = smul.addr %s1037, 256
        %s1039 = scalar_lea.vmem [#allocation11], %s1038
        // Predicated region
        $region57: #{tpu_custom_call.1} parent=39 // pred_check
          %p1040 = pneg %p154
        $region58: #{tpu_custom_call.1} parent=39 // pred_check_branch
          %1042 = sbr.rel (%p1040) target = $region60
        $region59: #{tpu_custom_call.1} parent=39 // pred_region
          %s1043 = smul.u32 32, %s26
          %s1044 = ssub.s32 75, %s1043
          %p1045 = scmp.lt.s32.totalorder %s1044, 32
          %s1046 = scalar_select %p1045, %s1044, 32
          %s1047 = smul.u32 128, %s1046
          %s1049 = ssub.s32 4096, %s1047
          %1050 = vsyncadd %s1036, %s1049
          %p1051 = scmp.ne.s32.totalorder 0, %s1047
          %s1052 = smul.addr %s1043, 128
          %s1053 = scalar_lea.hbm %s5, %s1052
          %s1054 = smul.u32 8, %s1046
          %s1055 = sshll.u32 %s1039, 4
          %s1056 = int_to_ptr.vmem [resolvable:$true] %s1055
          %s1057 = sshll.u32 %s1054, 4
          %1061 = dma.vmem_to_hbm [thread:$0]  (%p1051), %s1056, %s1057, %s1053, %s1036, 128, 128, 8
        $region60: #{tpu_custom_call.1} parent=39 // pred_fallthru
          _
      $region40: #{tpu_custom_call.1} parent=5 // pred_fallthru
        _
      %p1062 = scmp.le.s32.totalorder 2, %s21
      // Predicated region
      $region61: #{tpu_custom_call.1} parent=5 // pred_check
        %p1063 = pneg %p1062
      $region62: #{tpu_custom_call.1} parent=5 // pred_check_branch
        %1065 = sbr.rel (%p1063) target = $region64
      $region63: #{tpu_custom_call.1} parent=5 // pred_region
        %s1066 = ssub.s32 %s21, 2
        // Predicated region
        $region65: #{tpu_custom_call.1} parent=63 // pred_check
          %p1067 = pneg %p160
        $region66: #{tpu_custom_call.1} parent=63 // pred_check_branch
          %1069 = sbr.rel (%p1067) target = $region68
        $region67: #{tpu_custom_call.1} parent=63 // pred_region
          %s1070 = sand.u32 %s145, 1
          %s1071 = scalar_lea.sflag [#allocation5], %s1070
          %s1072 = sand.u32 %s145, 1
          %s1073 = smul.addr %s1072, 256
          %s1074 = scalar_lea.vmem [#allocation11], %s1073
          %1075 = dma.done %s1071, 4096
        $region68: #{tpu_custom_call.1} parent=63 // pred_fallthru
          _
      $region64: #{tpu_custom_call.1} parent=5 // pred_fallthru
        _
    $region6: #{tpu_custom_call.1} parent=1 // loop_footer
      %s25 = sadd.s32 1, %s21
    $region7: #{tpu_custom_call.1} parent=1 // loop_footer_branch
      %20 = sbr.rel target = $region3
    $region8: #{tpu_custom_call.1} parent=1 // loop_exit
      _
    %1076 = vsyncpa [#allocation4], 1
    %s1077 = scalar_lea.sflag [#allocation4], 1
    %1078 = vsyncpa %s1077, 1
    %1079 = vsyncpa [#allocation7], 1
    %1080 = vsyncpa [#allocation10], 1
    %1081 = vsyncpa [#allocation5], 1
    %s1082 = scalar_lea.sflag [#allocation5], 1
    %1083 = vsyncpa %s1082, 1

</llo_original>
